<compile_context>
chip_gen: v7x
topology: tpu7x:2x2x1
jax: 0.10.0
libtpu: 0.0.40
codegen_flags: <defaults>
</compile_context>

<pallas_src>
import functools

import jax
import jax.numpy as jnp
from jax.experimental import pallas as pl
from jax.experimental.pallas import tpu as pltpu


def _round_up(x, m):
    return (x + m - 1) // m * m


def _decoder_kernel(z_ref, w1_ref, w2_ref, w3_ref, vec_ref, out_ref,
                    *, n_batch, h_pad, d_pad, mm_dtype):
    """Fused forward on whole (padded) arrays resident in VMEM."""
    f32 = jnp.float32

    # Packed (8, Fmax) parameter block: rows are b1, b2, gamma, beta, b3.
    vec = vec_ref[...]
    b1 = vec[0:1, :h_pad]
    b2 = vec[1:2, :h_pad]
    gamma = vec[2:3, :h_pad]
    beta = vec[3:4, :h_pad]
    b3 = vec[4:5, :d_pad]

    # ---- Linear 1 + LeakyReLU(0.2) ----
    z = z_ref[...].astype(mm_dtype)
    h1 = jnp.dot(z, w1_ref[...], preferred_element_type=f32) + b1
    h1 = jnp.where(h1 > 0, h1, 0.2 * h1)

    # ---- Linear 2 ----
    h2 = jnp.dot(h1.astype(mm_dtype), w2_ref[...], preferred_element_type=f32) + b2

    # ---- BatchNorm1d (training mode: biased batch mean/var, eps=1e-5) ----
    b_padded = h2.shape[0]
    if b_padded == n_batch:
        mean = jnp.mean(h2, axis=0, keepdims=True)
        diff = h2 - mean
        var = jnp.mean(diff * diff, axis=0, keepdims=True)
    else:
        # Padded batch rows carry bias garbage -> mask them out of the stats
        # and divide by the true batch size.
        row = jax.lax.broadcasted_iota(jnp.int32, (b_padded, 1), 0)
        rmask = (row < n_batch).astype(f32)
        inv_n = 1.0 / n_batch
        mean = jnp.sum(h2 * rmask, axis=0, keepdims=True) * inv_n
        diff = (h2 - mean) * rmask
        var = jnp.sum(diff * diff, axis=0, keepdims=True) * inv_n
    h2n = (h2 - mean) * jax.lax.rsqrt(var + 1e-5) * gamma + beta

    # ---- LeakyReLU(0.2) ----
    h3 = jnp.where(h2n > 0, h2n, 0.2 * h2n)

    # ---- Linear 3 + Tanh ----
    out = jnp.dot(h3.astype(mm_dtype), w3_ref[...], preferred_element_type=f32) + b3
    out_ref[...] = jnp.tanh(out)


def decoder_forward(z, params, *, use_bf16=False):
    """z: (B, z_dim) float32. params: dict with transposed weights (in, out)
    and (1, out) biases / BN params. Returns (B, data_dim) float32."""
    B, z_dim = z.shape
    h_dim = params["w1"].shape[1]
    data_dim = params["w3"].shape[1]

    # Lane-pad every feature dim to a multiple of 128; sublane-pad the batch.
    zp_dim = _round_up(z_dim, 128)
    hp_dim = _round_up(h_dim, 128)
    dp_dim = _round_up(data_dim, 128)
    bp = _round_up(B, 8)
    fmax = max(hp_dim, dp_dim)

    mm_dtype = jnp.bfloat16 if use_bf16 else jnp.float32

    def pad2(x, rows, cols, dtype):
        buf = jnp.zeros((rows, cols), dtype)
        return buf.at[:x.shape[0], :x.shape[1]].set(x.astype(dtype))

    z_p = pad2(z, bp, zp_dim, jnp.float32)
    w1_p = pad2(params["w1"], zp_dim, hp_dim, mm_dtype)
    w2_p = pad2(params["w2"], hp_dim, hp_dim, mm_dtype)
    w3_p = pad2(params["w3"], hp_dim, dp_dim, mm_dtype)

    # Pack all (1, F) params into one (8, Fmax) f32 block -> single DMA.
    vec = jnp.zeros((8, fmax), jnp.float32)
    vec = vec.at[0, :h_dim].set(params["b1"].reshape(-1))
    vec = vec.at[1, :h_dim].set(params["b2"].reshape(-1))
    vec = vec.at[2, :h_dim].set(params["gamma"].reshape(-1))
    vec = vec.at[3, :h_dim].set(params["beta"].reshape(-1))
    vec = vec.at[4, :data_dim].set(params["b3"].reshape(-1))

    operands = (z_p, w1_p, w2_p, w3_p, vec)

    def full_spec(shape):
        # whole-array block, single grid step
        return pl.BlockSpec(shape, lambda i: (0,) * len(shape))

    kernel = functools.partial(
        _decoder_kernel,
        n_batch=B, h_pad=hp_dim, d_pad=dp_dim, mm_dtype=mm_dtype)

    out_p = pl.pallas_call(
        kernel,
        out_shape=jax.ShapeDtypeStruct((bp, dp_dim), jnp.float32),
        grid=(1,),
        in_specs=[full_spec(op.shape) for op in operands],
        out_specs=full_spec((bp, dp_dim)),
        compiler_params=pltpu.CompilerParams(
            dimension_semantics=("arbitrary",),
            vmem_limit_bytes=32 * 1024 * 1024),
    )(*operands)

    return out_p[:B, :data_dim]


def init_params(key, data_dim, h_dim, z_dim):
    """Deterministic init mirroring PyTorch defaults (U(-1/sqrt(fan_in), ...))."""
    ks = jax.random.split(key, 6)

    def linear(kw, kb, fan_in, fan_out):
        bound = 1.0 / jnp.sqrt(fan_in)
        # stored transposed: (in, out), bias as (1, out) for broadcasting
        w = jax.random.uniform(kw, (fan_in, fan_out), jnp.float32, -bound, bound)
        b = jax.random.uniform(kb, (1, fan_out), jnp.float32, -bound, bound)
        return w, b

    w1, b1 = linear(ks[0], ks[1], z_dim, h_dim)
    w2, b2 = linear(ks[2], ks[3], h_dim, h_dim)
    w3, b3 = linear(ks[4], ks[5], h_dim, data_dim)
    gamma = jnp.ones((1, h_dim), jnp.float32)   # BatchNorm1d weight
    beta = jnp.zeros((1, h_dim), jnp.float32)   # BatchNorm1d bias
    return {"w1": w1, "b1": b1, "w2": w2, "b2": b2,
            "gamma": gamma, "beta": beta, "w3": w3, "b3": b3}


def decoder_reference(z, params):
    """Pure-JAX reference matching the PyTorch forward (training-mode BN)."""
    h1 = z @ params["w1"] + params["b1"]
    h1 = jnp.where(h1 > 0, h1, 0.2 * h1)
    h2 = h1 @ params["w2"] + params["b2"]
    mean = jnp.mean(h2, axis=0, keepdims=True)
    var = jnp.mean((h2 - mean) ** 2, axis=0, keepdims=True)
    h2n = (h2 - mean) / jnp.sqrt(var + 1e-5) * params["gamma"] + params["beta"]
    h3 = jnp.where(h2n > 0, h2n, 0.2 * h2n)
    return jnp.tanh(h3 @ params["w3"] + params["b3"])


if __name__ == "__main__":
    B, z_dim, h_dim, data_dim = 8, 16, 32, 64

    key = jax.random.PRNGKey(0)
    kz, kp = jax.random.split(key)
    z = jax.random.normal(kz, (B, z_dim), jnp.float32)
    params = init_params(kp, data_dim, h_dim, z_dim)

    ref = decoder_reference(z, params)

    # f32 matmul path: bit-faithful to the PyTorch f32 forward.
    out = jax.block_until_ready(decoder_forward(z, params, use_bf16=False))
    assert out.shape == (B, data_dim)
    assert jnp.allclose(out, ref, atol=1e-5, rtol=1e-5)

    # bf16 matmul-input path (v6e/v7x perf option): f32 accumulation, so only
    # bf16 rounding error vs the f32 reference.
    out_bf16 = jax.block_until_ready(decoder_forward(z, params, use_bf16=True))
    assert out_bf16.shape == (B, data_dim)
    assert jnp.max(jnp.abs(out_bf16 - ref)) < 0.2

    print("KERNEL_OK")
</pallas_src>

<mosaic_0001>
module attributes {stable_mosaic.version = 11 : i64} {
  func.func @_decoder_kernel(%arg0: i32, %arg1: memref<8x128xf32, #tpu.memory_space<vmem>>, %arg2: memref<128x128xf32, #tpu.memory_space<vmem>>, %arg3: memref<128x128xf32, #tpu.memory_space<vmem>>, %arg4: memref<128x128xf32, #tpu.memory_space<vmem>>, %arg5: memref<8x128xf32, #tpu.memory_space<vmem>>, %arg6: memref<8x128xf32, #tpu.memory_space<vmem>>) attributes {dimension_semantics = [#tpu.dimension_semantics<arbitrary>], iteration_bounds = array<i64: 1>, scalar_prefetch = 0 : i64, scratch_operands = 0 : i64, tpu.core_type = #tpu.core_type<tc>, window_params = [{pipeline_mode = #tpu.pipeline_mode<synchronous>, transform_indices = @transform_0, window_bounds = array<i64: 8, 128>}, {pipeline_mode = #tpu.pipeline_mode<synchronous>, transform_indices = @transform_1, window_bounds = array<i64: 128, 128>}, {pipeline_mode = #tpu.pipeline_mode<synchronous>, transform_indices = @transform_2, window_bounds = array<i64: 128, 128>}, {pipeline_mode = #tpu.pipeline_mode<synchronous>, transform_indices = @transform_3, window_bounds = array<i64: 128, 128>}, {pipeline_mode = #tpu.pipeline_mode<synchronous>, transform_indices = @transform_4, window_bounds = array<i64: 8, 128>}, {pipeline_mode = #tpu.pipeline_mode<synchronous>, transform_indices = @transform_5, window_bounds = array<i64: 8, 128>}]} {
    %c0 = arith.constant 0 : index
    %c0_0 = arith.constant 0 : index
    %0 = vector.load %arg5[%c0, %c0_0] : memref<8x128xf32, #tpu.memory_space<vmem>>, vector<8x128xf32>
    %1 = vector.extract_strided_slice %0 {offsets = [0, 0], sizes = [1, 128], strides = [1, 1]} : vector<8x128xf32> to vector<1x128xf32>
    %2 = vector.extract_strided_slice %0 {offsets = [1, 0], sizes = [1, 128], strides = [1, 1]} : vector<8x128xf32> to vector<1x128xf32>
    %3 = vector.extract_strided_slice %0 {offsets = [2, 0], sizes = [1, 128], strides = [1, 1]} : vector<8x128xf32> to vector<1x128xf32>
    %4 = vector.extract_strided_slice %0 {offsets = [3, 0], sizes = [1, 128], strides = [1, 1]} : vector<8x128xf32> to vector<1x128xf32>
    %5 = vector.extract_strided_slice %0 {offsets = [4, 0], sizes = [1, 128], strides = [1, 1]} : vector<8x128xf32> to vector<1x128xf32>
    %c0_1 = arith.constant 0 : index
    %c0_2 = arith.constant 0 : index
    %6 = vector.load %arg1[%c0_1, %c0_2] : memref<8x128xf32, #tpu.memory_space<vmem>>, vector<8x128xf32>
    %c0_3 = arith.constant 0 : index
    %c0_4 = arith.constant 0 : index
    %7 = vector.load %arg2[%c0_3, %c0_4] : memref<128x128xf32, #tpu.memory_space<vmem>>, vector<128x128xf32>
    %cst = arith.constant dense<0.000000e+00> : vector<8x128xf32>
    %8 = tpu.matmul %6, %7, %cst {dimension_numbers = #tpu.dot_dimension_numbers<[1], [0], [0], [1], [0, 0, 1, 1], [], []>} : vector<8x128xf32>, vector<128x128xf32>, vector<8x128xf32> -> vector<8x128xf32>
    %9 = vector.broadcast %1 : vector<1x128xf32> to vector<8x128xf32>
    %10 = arith.addf %8, %9 : vector<8x128xf32>
    %cst_5 = arith.constant 0.000000e+00 : f32
    %11 = vector.broadcast %cst_5 : f32 to vector<8x128xf32>
    %12 = arith.cmpf ogt, %10, %11 : vector<8x128xf32>
    %cst_6 = arith.constant 2.000000e-01 : f32
    %13 = vector.broadcast %cst_6 : f32 to vector<8x128xf32>
    %14 = arith.mulf %13, %10 : vector<8x128xf32>
    %15 = arith.select %12, %10, %14 : vector<8x128xi1>, vector<8x128xf32>
    %c0_7 = arith.constant 0 : index
    %c0_8 = arith.constant 0 : index
    %16 = vector.load %arg3[%c0_7, %c0_8] : memref<128x128xf32, #tpu.memory_space<vmem>>, vector<128x128xf32>
    %cst_9 = arith.constant dense<0.000000e+00> : vector<8x128xf32>
    %17 = tpu.matmul %15, %16, %cst_9 {dimension_numbers = #tpu.dot_dimension_numbers<[1], [0], [0], [1], [0, 0, 1, 1], [], []>} : vector<8x128xf32>, vector<128x128xf32>, vector<8x128xf32> -> vector<8x128xf32>
    %18 = vector.broadcast %2 : vector<1x128xf32> to vector<8x128xf32>
    %19 = arith.addf %17, %18 : vector<8x128xf32>
    %cst_10 = arith.constant dense<0.000000e+00> : vector<128xf32>
    %20 = vector.multi_reduction <add>, %19, %cst_10 [0] : vector<8x128xf32> to vector<128xf32>
    %21 = vector.shape_cast %20 : vector<128xf32> to vector<1x128xf32>
    %cst_11 = arith.constant 8.000000e+00 : f32
    %22 = vector.broadcast %cst_11 : f32 to vector<1x128xf32>
    %23 = arith.divf %21, %22 : vector<1x128xf32>
    %24 = vector.broadcast %23 : vector<1x128xf32> to vector<8x128xf32>
    %25 = arith.subf %19, %24 : vector<8x128xf32>
    %26 = arith.mulf %25, %25 : vector<8x128xf32>
    %cst_12 = arith.constant dense<0.000000e+00> : vector<128xf32>
    %27 = vector.multi_reduction <add>, %26, %cst_12 [0] : vector<8x128xf32> to vector<128xf32>
    %28 = vector.shape_cast %27 : vector<128xf32> to vector<1x128xf32>
    %cst_13 = arith.constant 8.000000e+00 : f32
    %29 = vector.broadcast %cst_13 : f32 to vector<1x128xf32>
    %30 = arith.divf %28, %29 : vector<1x128xf32>
    %31 = vector.broadcast %23 : vector<1x128xf32> to vector<8x128xf32>
    %32 = arith.subf %19, %31 : vector<8x128xf32>
    %cst_14 = arith.constant 9.99999974E-6 : f32
    %33 = vector.broadcast %cst_14 : f32 to vector<1x128xf32>
    %34 = arith.addf %30, %33 : vector<1x128xf32>
    %35 = math.rsqrt %34 : vector<1x128xf32>
    %36 = vector.broadcast %35 : vector<1x128xf32> to vector<8x128xf32>
    %37 = arith.mulf %32, %36 : vector<8x128xf32>
    %38 = vector.broadcast %3 : vector<1x128xf32> to vector<8x128xf32>
    %39 = arith.mulf %37, %38 : vector<8x128xf32>
    %40 = vector.broadcast %4 : vector<1x128xf32> to vector<8x128xf32>
    %41 = arith.addf %39, %40 : vector<8x128xf32>
    %cst_15 = arith.constant 0.000000e+00 : f32
    %42 = vector.broadcast %cst_15 : f32 to vector<8x128xf32>
    %43 = arith.cmpf ogt, %41, %42 : vector<8x128xf32>
    %cst_16 = arith.constant 2.000000e-01 : f32
    %44 = vector.broadcast %cst_16 : f32 to vector<8x128xf32>
    %45 = arith.mulf %44, %41 : vector<8x128xf32>
    %46 = arith.select %43, %41, %45 : vector<8x128xi1>, vector<8x128xf32>
    %c0_17 = arith.constant 0 : index
    %c0_18 = arith.constant 0 : index
    %47 = vector.load %arg4[%c0_17, %c0_18] : memref<128x128xf32, #tpu.memory_space<vmem>>, vector<128x128xf32>
    %cst_19 = arith.constant dense<0.000000e+00> : vector<8x128xf32>
    %48 = tpu.matmul %46, %47, %cst_19 {dimension_numbers = #tpu.dot_dimension_numbers<[1], [0], [0], [1], [0, 0, 1, 1], [], []>} : vector<8x128xf32>, vector<128x128xf32>, vector<8x128xf32> -> vector<8x128xf32>
    %49 = vector.broadcast %5 : vector<1x128xf32> to vector<8x128xf32>
    %50 = arith.addf %48, %49 : vector<8x128xf32>
    %51 = math.tanh %50 : vector<8x128xf32>
    %c0_20 = arith.constant 0 : index
    %c0_21 = arith.constant 0 : index
    %52 = vector.load %arg6[%c0_20, %c0_21] : memref<8x128xf32, #tpu.memory_space<vmem>>, vector<8x128xf32>
    tpu.vector_store %arg6[%c0_20, %c0_21], %51 {strides = array<i32>} : memref<8x128xf32, #tpu.memory_space<vmem>>, vector<8x128xf32>,
    return
  }
  func.func @transform_0(%arg0: i32) -> (i32, i32) {
    %c0_i32 = arith.constant 0 : i32
    %c0_i32_0 = arith.constant 0 : i32
    %c0_i32_1 = arith.constant 0 : i32
    return %c0_i32, %c0_i32_0 : i32, i32
  }
  func.func @transform_1(%arg0: i32) -> (i32, i32) {
    %c0_i32 = arith.constant 0 : i32
    %c0_i32_0 = arith.constant 0 : i32
    %c0_i32_1 = arith.constant 0 : i32
    return %c0_i32, %c0_i32_0 : i32, i32
  }
  func.func @transform_2(%arg0: i32) -> (i32, i32) {
    %c0_i32 = arith.constant 0 : i32
    %c0_i32_0 = arith.constant 0 : i32
    %c0_i32_1 = arith.constant 0 : i32
    return %c0_i32, %c0_i32_0 : i32, i32
  }
  func.func @transform_3(%arg0: i32) -> (i32, i32) {
    %c0_i32 = arith.constant 0 : i32
    %c0_i32_0 = arith.constant 0 : i32
    %c0_i32_1 = arith.constant 0 : i32
    return %c0_i32, %c0_i32_0 : i32, i32
  }
  func.func @transform_4(%arg0: i32) -> (i32, i32) {
    %c0_i32 = arith.constant 0 : i32
    %c0_i32_0 = arith.constant 0 : i32
    %c0_i32_1 = arith.constant 0 : i32
    return %c0_i32, %c0_i32_0 : i32, i32
  }
  func.func @transform_5(%arg0: i32) -> (i32, i32) {
    %c0_i32 = arith.constant 0 : i32
    %c0_i32_0 = arith.constant 0 : i32
    %c0_i32_1 = arith.constant 0 : i32
    return %c0_i32, %c0_i32_0 : i32, i32
  }
}

</mosaic_0001>

<llo_original>
// kernel: tpu_custom_call.1
$region0: #{tpu_custom_call.1}
  #allocation0 [shape = 'u32[]', space=smem, size = 0x4, offset = 0x4, fixed_abs, tag = 'smem constant byte address 0x4 - core index']
  #allocation1 [shape = 'u32[144,128]{1,0:T(1,128)}', space=vmem, size = 0x12000, scoped, tag = 'internal scratch']
  %s0 = inlined_call_operand.hbm [shape: f32[8,128], index: 0, kind: input, shape index: {}]
  %s1 = inlined_call_operand.hbm [shape: f32[128,128], index: 1, kind: input, shape index: {}]
  %s2 = inlined_call_operand.hbm [shape: f32[128,128], index: 2, kind: input, shape index: {}]
  %s3 = inlined_call_operand.hbm [shape: f32[128,128], index: 3, kind: input, shape index: {}]
  %s4 = inlined_call_operand.vmem [shape: f32[8,128], index: 4, kind: input, shape index: {}]
  %s5 = inlined_call_operand.hbm [shape: f32[8,128], index: 5, kind: output, shape index: {}]
  %s6 = sld [smem:[#allocation0]]
  $region46: #{tpu_custom_call.1} parent=0
    _
  %s8 = ssub.s32 1, %s6
  %s9 = scalar_select 0, %s8, %s6
  $region1: #{tpu_custom_call.1} parent=0
    #allocation2 [shape = 'u8[4096]{0}', space=vmem, size = 0x1000, scoped, tag = 'input window, operand 0, single buffered']
    #allocation3 [shape = 's32[1]{0}', space=sflag, size = 0x4, scoped, tag = 'scoped memory for tpu_custom_call.1']
    #allocation4 [shape = 's32[1]{0}', space=sflag, size = 0x4, scoped, tag = 'scoped memory for tpu_custom_call.1']
    #allocation5 [shape = 'u8[65536]{0}', space=vmem, size = 0x10000, scoped, tag = 'input window, operand 1, single buffered']
    #allocation6 [shape = 's32[1]{0}', space=sflag, size = 0x4, scoped, tag = 'scoped memory for tpu_custom_call.1']
    #allocation7 [shape = 'u8[65536]{0}', space=vmem, size = 0x10000, scoped, tag = 'input window, operand 2, single buffered']
    #allocation8 [shape = 'u8[65536]{0}', space=vmem, size = 0x10000, scoped, tag = 'input window, operand 3, single buffered']
    #allocation9 [shape = 's32[1]{0}', space=sflag, size = 0x4, scoped, tag = 'scoped memory for tpu_custom_call.1']
    #allocation10 [shape = 'u8[4096]{0}', space=vmem, size = 0x1000, scoped, tag = 'output window, operand 0, single buffered']
    %10 = vsyncpa [#allocation3], 0
    %11 = vsyncpa [#allocation6], 0
    %12 = vsyncpa [#allocation9], 0
    %13 = vsyncpa [#allocation4], 0
    // Predicated region
    $region2: #{tpu_custom_call.1} parent=1 // pred_check
      _
    $region3: #{tpu_custom_call.1} parent=1 // pred_check_branch
      %15 = sbr.rel (0) target = $region5
    $region4: #{tpu_custom_call.1} parent=1 // pred_region
      %s17 = ssub.s32 128, 128
      %18 = vsyncadd [#allocation3], %s17
      %s20 = sshll.u32 [#allocation2], 4
      %s21 = int_to_ptr.vmem [resolvable:$true] %s20
      %23 = dma.hbm_to_vmem [thread:$0]  %s0, 128, %s21, [#allocation3]
    $region5: #{tpu_custom_call.1} parent=1 // pred_fallthru
      _
    // Predicated region
    $region6: #{tpu_custom_call.1} parent=1 // pred_check
      _
    $region7: #{tpu_custom_call.1} parent=1 // pred_check_branch
      %25 = sbr.rel (0) target = $region9
    $region8: #{tpu_custom_call.1} parent=1 // pred_region
      %s27 = ssub.s32 2048, 2048
      %28 = vsyncadd [#allocation6], %s27
      %s29 = sshll.u32 [#allocation5], 4
      %s30 = int_to_ptr.vmem [resolvable:$true] %s29
      %35 = dma.hbm_to_vmem [thread:$0]  %s1, 2048, %s30, [#allocation6], 128, 128, 8
    $region9: #{tpu_custom_call.1} parent=1 // pred_fallthru
      _
    // Predicated region
    $region10: #{tpu_custom_call.1} parent=1 // pred_check
      _
    $region11: #{tpu_custom_call.1} parent=1 // pred_check_branch
      %37 = sbr.rel (0) target = $region13
    $region12: #{tpu_custom_call.1} parent=1 // pred_region
      %s39 = ssub.s32 2048, 2048
      %40 = vsyncadd [#allocation6], %s39
      %s41 = sshll.u32 [#allocation7], 4
      %s42 = int_to_ptr.vmem [resolvable:$true] %s41
      %47 = dma.hbm_to_vmem [thread:$0]  %s2, 2048, %s42, [#allocation6], 128, 128, 8
    $region13: #{tpu_custom_call.1} parent=1 // pred_fallthru
      _
    // Predicated region
    $region14: #{tpu_custom_call.1} parent=1 // pred_check
      _
    $region15: #{tpu_custom_call.1} parent=1 // pred_check_branch
      %49 = sbr.rel (0) target = $region17
    $region16: #{tpu_custom_call.1} parent=1 // pred_region
      %s51 = ssub.s32 2048, 2048
      %52 = vsyncadd [#allocation9], %s51
      %s53 = sshll.u32 [#allocation8], 4
      %s54 = int_to_ptr.vmem [resolvable:$true] %s53
      %59 = dma.hbm_to_vmem [thread:$0]  %s3, 2048, %s54, [#allocation9], 128, 128, 8
    $region17: #{tpu_custom_call.1} parent=1 // pred_fallthru
      _
    // Predicated region
    $region18: #{tpu_custom_call.1} parent=1 // pred_check
      _
    $region19: #{tpu_custom_call.1} parent=1 // pred_check_branch
      %61 = sbr.rel (0) target = $region21
    $region20: #{tpu_custom_call.1} parent=1 // pred_region
      _
    $region21: #{tpu_custom_call.1} parent=1 // pred_fallthru
      _
    // Predicated region
    $region22: #{tpu_custom_call.1} parent=1 // pred_check
      _
    $region23: #{tpu_custom_call.1} parent=1 // pred_check_branch
      %63 = sbr.rel (0) target = $region25
    $region24: #{tpu_custom_call.1} parent=1 // pred_region
      %64 = dma.done [#allocation3], 128
    $region25: #{tpu_custom_call.1} parent=1 // pred_fallthru
      _
    // Predicated region
    $region26: #{tpu_custom_call.1} parent=1 // pred_check
      _
    $region27: #{tpu_custom_call.1} parent=1 // pred_check_branch
      %66 = sbr.rel (0) target = $region29
    $region28: #{tpu_custom_call.1} parent=1 // pred_region
      %67 = dma.done [#allocation6], 2048
    $region29: #{tpu_custom_call.1} parent=1 // pred_fallthru
      _
    // Predicated region
    $region30: #{tpu_custom_call.1} parent=1 // pred_check
      _
    $region31: #{tpu_custom_call.1} parent=1 // pred_check_branch
      %69 = sbr.rel (0) target = $region33
    $region32: #{tpu_custom_call.1} parent=1 // pred_region
      %70 = dma.done [#allocation6], 2048
    $region33: #{tpu_custom_call.1} parent=1 // pred_fallthru
      _
    // Predicated region
    $region34: #{tpu_custom_call.1} parent=1 // pred_check
      _
    $region35: #{tpu_custom_call.1} parent=1 // pred_check_branch
      %72 = sbr.rel (0) target = $region37
    $region36: #{tpu_custom_call.1} parent=1 // pred_region
      %73 = dma.done [#allocation9], 2048
    $region37: #{tpu_custom_call.1} parent=1 // pred_fallthru
      _
    %v74 = vld [vmem:[%s4] sm:$0xff]
    %v75 = vld [vmem:[#allocation2] sm:$0xff]
    %v76 = vld [vmem:[#allocation5] sm:$0xff]
    %v77 = vld [vmem:[#allocation5 + $0x8] sm:$0xff]
    %v78 = vld [vmem:[#allocation5 + $0x10] sm:$0xff]
    %v79 = vld [vmem:[#allocation5 + $0x18] sm:$0xff]
    %v80 = vld [vmem:[#allocation5 + $0x20] sm:$0xff]
    %v81 = vld [vmem:[#allocation5 + $0x28] sm:$0xff]
    %v82 = vld [vmem:[#allocation5 + $0x30] sm:$0xff]
    %v83 = vld [vmem:[#allocation5 + $0x38] sm:$0xff]
    %v84 = vld [vmem:[#allocation5 + $0x40] sm:$0xff]
    %v85 = vld [vmem:[#allocation5 + $0x48] sm:$0xff]
    %v86 = vld [vmem:[#allocation5 + $0x50] sm:$0xff]
    %v87 = vld [vmem:[#allocation5 + $0x58] sm:$0xff]
    %v88 = vld [vmem:[#allocation5 + $0x60] sm:$0xff]
    %v89 = vld [vmem:[#allocation5 + $0x68] sm:$0xff]
    %v90 = vld [vmem:[#allocation5 + $0x70] sm:$0xff]
    %v91 = vld [vmem:[#allocation5 + $0x78] sm:$0xff]
    %v92 = vlaneseq
    %v93 = vshrl.u32 %v92, 7
    %v94 = vsub.s32 0, %v93
    %v95 = vrot.slane %v74, %v94
    %96 = vmatprep.subr.mxu0 0.0
    %97 = vmatpush1.msra.mxu0 %v76
    %98 = vmatprep.subr.mxu0 0.0
    %99 = vmatpush1.msra.mxu0 %v77
    %100 = vmatprep.subr.mxu0 0.0
    %101 = vmatpush1.msra.mxu0 %v78
    %102 = vmatprep.subr.mxu0 0.0
    %103 = vmatpush1.msra.mxu0 %v79
    %104 = vmatprep.subr.mxu0 0.0
    %105 = vmatpush1.msra.mxu0 %v80
    %106 = vmatprep.subr.mxu0 0.0
    %107 = vmatpush1.msra.mxu0 %v81
    %108 = vmatprep.subr.mxu0 0.0
    %109 = vmatpush1.msra.mxu0 %v82
    %110 = vmatprep.subr.mxu0 0.0
    %111 = vmatpush1.msra.mxu0 %v83
    %112 = vmatprep.subr.mxu0 0.0
    %113 = vmatpush1.msra.mxu0 %v84
    %114 = vmatprep.subr.mxu0 0.0
    %115 = vmatpush1.msra.mxu0 %v85
    %116 = vmatprep.subr.mxu0 0.0
    %117 = vmatpush1.msra.mxu0 %v86
    %118 = vmatprep.subr.mxu0 0.0
    %119 = vmatpush1.msra.mxu0 %v87
    %120 = vmatprep.subr.mxu0 0.0
    %121 = vmatpush1.msra.mxu0 %v88
    %122 = vmatprep.subr.mxu0 0.0
    %123 = vmatpush1.msra.mxu0 %v89
    %124 = vmatprep.subr.mxu0 0.0
    %125 = vmatpush1.msra.mxu0 %v90
    %126 = vmatprep.subr.mxu0 0.0
    %127 = vmatpush1.msra.mxu0 %v91
    %128 = vmatprep.subr.mxu0 0.0
    %129 = vmatpush1.msra.mxu0 0.0
    %130 = vmatprep.subr.mxu0 0.0
    %131 = vmatpush1.msra.mxu0 0.0
    %132 = vmatprep.subr.mxu0 0.0
    %133 = vmatpush1.msra.mxu0 0.0
    %134 = vmatprep.subr.mxu0 0.0
    %135 = vmatpush1.msra.mxu0 0.0
    %136 = vmatprep.subr.mxu0 0.0
    %137 = vmatpush1.msra.mxu0 0.0
    %138 = vmatprep.subr.mxu0 0.0
    %139 = vmatpush1.msra.mxu0 0.0
    %140 = vmatprep.subr.mxu0 0.0
    %141 = vmatpush1.msra.mxu0 0.0
    %142 = vmatprep.subr.mxu0 0.0
    %143 = vmatpush1.msra.mxu0 0.0
    %144 = vmatprep.subr.mxu0 0.0
    %145 = vmatpush1.msra.mxu0 0.0
    %146 = vmatprep.subr.mxu0 0.0
    %147 = vmatpush1.msra.mxu0 0.0
    %148 = vmatprep.subr.mxu0 0.0
    %149 = vmatpush1.msra.mxu0 0.0
    %150 = vmatprep.subr.mxu0 0.0
    %151 = vmatpush1.msra.mxu0 0.0
    %152 = vmatprep.subr.mxu0 0.0
    %153 = vmatpush1.msra.mxu0 0.0
    %154 = vmatprep.subr.mxu0 0.0
    %155 = vmatpush1.msra.mxu0 0.0
    %156 = vmatprep.subr.mxu0 0.0
    %157 = vmatpush1.msra.mxu0 0.0
    %158 = vmatprep.subr.mxu0 0.0
    %159 = vmatpush1.msra.mxu0 0.0
    %160 = vmatprep.mubr.f32.mxu0 0.0
    %161 = vmatmul.mubr.f32.gmra.mrb[0].mxu0 %v75
    %v162 = vpop.f32.mrb[0].mxu0
    %v163 = vadd.f32 %v95, %v162
    %v164 = vpop.f32.mrb[0].mxu0
    %165 = vdwg.mxu0
    %vm166 = vcmp.gt.f32.partialorder %v163, 0.0
    %v167 = vmul.f32 %v163, 0.2
    %v168 = vsel %vm166, %v163, %v167
    %v169 = vld [vmem:[#allocation7] sm:$0xff]
    %v170 = vld [vmem:[#allocation7 + $0x8] sm:$0xff]
    %v171 = vld [vmem:[#allocation7 + $0x10] sm:$0xff]
    %v172 = vld [vmem:[#allocation7 + $0x18] sm:$0xff]
    %v173 = vld [vmem:[#allocation7 + $0x20] sm:$0xff]
    %v174 = vld [vmem:[#allocation7 + $0x28] sm:$0xff]
    %v175 = vld [vmem:[#allocation7 + $0x30] sm:$0xff]
    %v176 = vld [vmem:[#allocation7 + $0x38] sm:$0xff]
    %v177 = vld [vmem:[#allocation7 + $0x40] sm:$0xff]
    %v178 = vld [vmem:[#allocation7 + $0x48] sm:$0xff]
    %v179 = vld [vmem:[#allocation7 + $0x50] sm:$0xff]
    %v180 = vld [vmem:[#allocation7 + $0x58] sm:$0xff]
    %v181 = vld [vmem:[#allocation7 + $0x60] sm:$0xff]
    %v182 = vld [vmem:[#allocation7 + $0x68] sm:$0xff]
    %v183 = vld [vmem:[#allocation7 + $0x70] sm:$0xff]
    %v184 = vld [vmem:[#allocation7 + $0x78] sm:$0xff]
    %v185 = vlaneseq
    %v186 = vshrl.u32 %v185, 7
    %v187 = vsub.s32 1, %v186
    %v188 = vrot.slane %v74, %v187
    %189 = vmatprep.subr.mxu0 0.0
    %190 = vmatpush1.msra.mxu0 %v169
    %191 = vmatprep.subr.mxu0 0.0
    %192 = vmatpush1.msra.mxu0 %v170
    %193 = vmatprep.subr.mxu0 0.0
    %194 = vmatpush1.msra.mxu0 %v171
    %195 = vmatprep.subr.mxu0 0.0
    %196 = vmatpush1.msra.mxu0 %v172
    %197 = vmatprep.subr.mxu0 0.0
    %198 = vmatpush1.msra.mxu0 %v173
    %199 = vmatprep.subr.mxu0 0.0
    %200 = vmatpush1.msra.mxu0 %v174
    %201 = vmatprep.subr.mxu0 0.0
    %202 = vmatpush1.msra.mxu0 %v175
    %203 = vmatprep.subr.mxu0 0.0
    %204 = vmatpush1.msra.mxu0 %v176
    %205 = vmatprep.subr.mxu0 0.0
    %206 = vmatpush1.msra.mxu0 %v177
    %207 = vmatprep.subr.mxu0 0.0
    %208 = vmatpush1.msra.mxu0 %v178
    %209 = vmatprep.subr.mxu0 0.0
    %210 = vmatpush1.msra.mxu0 %v179
    %211 = vmatprep.subr.mxu0 0.0
    %212 = vmatpush1.msra.mxu0 %v180
    %213 = vmatprep.subr.mxu0 0.0
    %214 = vmatpush1.msra.mxu0 %v181
    %215 = vmatprep.subr.mxu0 0.0
    %216 = vmatpush1.msra.mxu0 %v182
    %217 = vmatprep.subr.mxu0 0.0
    %218 = vmatpush1.msra.mxu0 %v183
    %219 = vmatprep.subr.mxu0 0.0
    %220 = vmatpush1.msra.mxu0 %v184
    %221 = vmatprep.subr.mxu0 0.0
    %222 = vmatpush1.msra.mxu0 0.0
    %223 = vmatprep.subr.mxu0 0.0
    %224 = vmatpush1.msra.mxu0 0.0
    %225 = vmatprep.subr.mxu0 0.0
    %226 = vmatpush1.msra.mxu0 0.0
    %227 = vmatprep.subr.mxu0 0.0
    %228 = vmatpush1.msra.mxu0 0.0
    %229 = vmatprep.subr.mxu0 0.0
    %230 = vmatpush1.msra.mxu0 0.0
    %231 = vmatprep.subr.mxu0 0.0
    %232 = vmatpush1.msra.mxu0 0.0
    %233 = vmatprep.subr.mxu0 0.0
    %234 = vmatpush1.msra.mxu0 0.0
    %235 = vmatprep.subr.mxu0 0.0
    %236 = vmatpush1.msra.mxu0 0.0
    %237 = vmatprep.subr.mxu0 0.0
    %238 = vmatpush1.msra.mxu0 0.0
    %239 = vmatprep.subr.mxu0 0.0
    %240 = vmatpush1.msra.mxu0 0.0
    %241 = vmatprep.subr.mxu0 0.0
    %242 = vmatpush1.msra.mxu0 0.0
    %243 = vmatprep.subr.mxu0 0.0
    %244 = vmatpush1.msra.mxu0 0.0
    %245 = vmatprep.subr.mxu0 0.0
    %246 = vmatpush1.msra.mxu0 0.0
    %247 = vmatprep.subr.mxu0 0.0
    %248 = vmatpush1.msra.mxu0 0.0
    %249 = vmatprep.subr.mxu0 0.0
    %250 = vmatpush1.msra.mxu0 0.0
    %251 = vmatprep.subr.mxu0 0.0
    %252 = vmatpush1.msra.mxu0 0.0
    %253 = vmatprep.mubr.f32.mxu0 0.0
    %254 = vmatmul.mubr.f32.gmra.mrb[0].mxu0 %v168
    %v255 = vpop.f32.mrb[0].mxu0
    %v256 = vadd.f32 %v188, %v255
    %v257 = vpop.f32.mrb[0].mxu0
    %258 = vdwg.mxu0
    %v259 = vrot.slane %v256, 4
    %v260 = vadd.f32 %v256, %v259
    %v261 = vrot.slane %v260, 2
    %v262 = vadd.f32 %v260, %v261
    %v263 = vrot.slane %v262, 1
    %v264 = vadd.f32 %v262, %v263
    %v265 = vrcp.pop 8.0
    %v266 = vmul.f32 %v264, %v265
    %v267 = vsub.f32 %v256, %v266
    %v268 = vmul.f32 %v267, %v267
    %v269 = vrot.slane %v268, 4
    %v270 = vadd.f32 %v268, %v269
    %v271 = vrot.slane %v270, 2
    %v272 = vadd.f32 %v270, %v271
    %v273 = vrot.slane %v272, 1
    %v274 = vadd.f32 %v272, %v273
    %v275 = vmul.f32 %v274, %v265
    %v276 = vadd.f32 %v275, 1e-05
    %v277 = vrsqrt.pop %v276
    %v278 = vmul.f32 %v267, %v277
    %v279 = vlaneseq
    %v280 = vshrl.u32 %v279, 7
    %v281 = vsub.s32 2, %v280
    %v282 = vrot.slane %v74, %v281
    %v283 = vmul.f32 %v278, %v282
    %v284 = vlaneseq
    %v285 = vshrl.u32 %v284, 7
    %v286 = vsub.s32 3, %v285
    %v287 = vrot.slane %v74, %v286
    %v288 = vadd.f32 %v283, %v287
    %vm289 = vcmp.gt.f32.partialorder %v288, 0.0
    %v290 = vmul.f32 %v288, 0.2
    %v291 = vsel %vm289, %v288, %v290
    %v292 = vld [vmem:[#allocation8] sm:$0xff]
    %v293 = vld [vmem:[#allocation8 + $0x8] sm:$0xff]
    %v294 = vld [vmem:[#allocation8 + $0x10] sm:$0xff]
    %v295 = vld [vmem:[#allocation8 + $0x18] sm:$0xff]
    %v296 = vld [vmem:[#allocation8 + $0x20] sm:$0xff]
    %v297 = vld [vmem:[#allocation8 + $0x28] sm:$0xff]
    %v298 = vld [vmem:[#allocation8 + $0x30] sm:$0xff]
    %v299 = vld [vmem:[#allocation8 + $0x38] sm:$0xff]
    %v300 = vld [vmem:[#allocation8 + $0x40] sm:$0xff]
    %v301 = vld [vmem:[#allocation8 + $0x48] sm:$0xff]
    %v302 = vld [vmem:[#allocation8 + $0x50] sm:$0xff]
    %v303 = vld [vmem:[#allocation8 + $0x58] sm:$0xff]
    %v304 = vld [vmem:[#allocation8 + $0x60] sm:$0xff]
    %v305 = vld [vmem:[#allocation8 + $0x68] sm:$0xff]
    %v306 = vld [vmem:[#allocation8 + $0x70] sm:$0xff]
    %v307 = vld [vmem:[#allocation8 + $0x78] sm:$0xff]
    %v308 = vlaneseq
    %v309 = vshrl.u32 %v308, 7
    %v310 = vsub.s32 4, %v309
    %v311 = vrot.slane %v74, %v310
    %312 = vmatprep.subr.mxu0 0.0
    %313 = vmatpush1.msra.mxu0 %v292
    %314 = vmatprep.subr.mxu0 0.0
    %315 = vmatpush1.msra.mxu0 %v293
    %316 = vmatprep.subr.mxu0 0.0
    %317 = vmatpush1.msra.mxu0 %v294
    %318 = vmatprep.subr.mxu0 0.0
    %319 = vmatpush1.msra.mxu0 %v295
    %320 = vmatprep.subr.mxu0 0.0
    %321 = vmatpush1.msra.mxu0 %v296
    %322 = vmatprep.subr.mxu0 0.0
    %323 = vmatpush1.msra.mxu0 %v297
    %324 = vmatprep.subr.mxu0 0.0
    %325 = vmatpush1.msra.mxu0 %v298
    %326 = vmatprep.subr.mxu0 0.0
    %327 = vmatpush1.msra.mxu0 %v299
    %328 = vmatprep.subr.mxu0 0.0
    %329 = vmatpush1.msra.mxu0 %v300
    %330 = vmatprep.subr.mxu0 0.0
    %331 = vmatpush1.msra.mxu0 %v301
    %332 = vmatprep.subr.mxu0 0.0
    %333 = vmatpush1.msra.mxu0 %v302
    %334 = vmatprep.subr.mxu0 0.0
    %335 = vmatpush1.msra.mxu0 %v303
    %336 = vmatprep.subr.mxu0 0.0
    %337 = vmatpush1.msra.mxu0 %v304
    %338 = vmatprep.subr.mxu0 0.0
    %339 = vmatpush1.msra.mxu0 %v305
    %340 = vmatprep.subr.mxu0 0.0
    %341 = vmatpush1.msra.mxu0 %v306
    %342 = vmatprep.subr.mxu0 0.0
    %343 = vmatpush1.msra.mxu0 %v307
    %344 = vmatprep.subr.mxu0 0.0
    %345 = vmatpush1.msra.mxu0 0.0
    %346 = vmatprep.subr.mxu0 0.0
    %347 = vmatpush1.msra.mxu0 0.0
    %348 = vmatprep.subr.mxu0 0.0
    %349 = vmatpush1.msra.mxu0 0.0
    %350 = vmatprep.subr.mxu0 0.0
    %351 = vmatpush1.msra.mxu0 0.0
    %352 = vmatprep.subr.mxu0 0.0
    %353 = vmatpush1.msra.mxu0 0.0
    %354 = vmatprep.subr.mxu0 0.0
    %355 = vmatpush1.msra.mxu0 0.0
    %356 = vmatprep.subr.mxu0 0.0
    %357 = vmatpush1.msra.mxu0 0.0
    %358 = vmatprep.subr.mxu0 0.0
    %359 = vmatpush1.msra.mxu0 0.0
    %360 = vmatprep.subr.mxu0 0.0
    %361 = vmatpush1.msra.mxu0 0.0
    %362 = vmatprep.subr.mxu0 0.0
    %363 = vmatpush1.msra.mxu0 0.0
    %364 = vmatprep.subr.mxu0 0.0
    %365 = vmatpush1.msra.mxu0 0.0
    %366 = vmatprep.subr.mxu0 0.0
    %367 = vmatpush1.msra.mxu0 0.0
    %368 = vmatprep.subr.mxu0 0.0
    %369 = vmatpush1.msra.mxu0 0.0
    %370 = vmatprep.subr.mxu0 0.0
    %371 = vmatpush1.msra.mxu0 0.0
    %372 = vmatprep.subr.mxu0 0.0
    %373 = vmatpush1.msra.mxu0 0.0
    %374 = vmatprep.subr.mxu0 0.0
    %375 = vmatpush1.msra.mxu0 0.0
    %376 = vmatprep.mubr.f32.mxu0 0.0
    %377 = vmatmul.mubr.f32.gmra.mrb[0].mxu0 %v291
    %v378 = vpop.f32.mrb[0].mxu0
    %v379 = vadd.f32 %v311, %v378
    %v380 = vpop.f32.mrb[0].mxu0
    %381 = vdwg.mxu0
    %v382 = vtanh.pop %v379
    %383 = vst [vmem:[#allocation10] sm:$0xff] %v382
    // Predicated region
    $region38: #{tpu_custom_call.1} parent=1 // pred_check
      _
    $region39: #{tpu_custom_call.1} parent=1 // pred_check_branch
      %385 = sbr.rel (0) target = $region41
    $region40: #{tpu_custom_call.1} parent=1 // pred_region
      %s387 = ssub.s32 128, 128
      %388 = vsyncadd [#allocation4], %s387
      %s390 = sshll.u32 [#allocation10], 4
      %s391 = int_to_ptr.vmem [resolvable:$true] %s390
      %393 = dma.vmem_to_hbm [thread:$0]  %s391, 128, %s5, [#allocation4]
    $region41: #{tpu_custom_call.1} parent=1 // pred_fallthru
      _
    // Predicated region
    $region42: #{tpu_custom_call.1} parent=1 // pred_check
      _
    $region43: #{tpu_custom_call.1} parent=1 // pred_check_branch
      %395 = sbr.rel (0) target = $region45
    $region44: #{tpu_custom_call.1} parent=1 // pred_region
      %396 = dma.done [#allocation4], 128
    $region45: #{tpu_custom_call.1} parent=1 // pred_fallthru
      _
    %397 = vsyncpa [#allocation3], 1
    %398 = vsyncpa [#allocation6], 1
    %399 = vsyncpa [#allocation9], 1
    %400 = vsyncpa [#allocation4], 1

</llo_original>
